<compile_context>
chip_gen: v5e
topology: v5e:2x2
jax: 0.10.0
libtpu: 0.0.40
codegen_flags: <defaults>
</compile_context>

<pallas_src>
import jax
import jax.numpy as jnp
from jax.experimental import pallas as pl
from jax.experimental.pallas import tpu as pltpu


def _masking_pretrainer_kernel(x_ref, m_ref, w1x_ref, w1m_ref, b1_ref,
                               w2_ref, b2_ref, o_ref):
    # Native-dtype loads; elementwise masking in f32 (no-op cast for f32 inputs).
    x = x_ref[...].astype(jnp.float32)
    m = m_ref[...].astype(jnp.float32)
    xm = (x * m).astype(w1x_ref.dtype)          # one downcast -> bf16 MXU feed
    mm = m.astype(w1m_ref.dtype)

    # Split first layer: concat([x*m, m]) @ w1  ==  (x*m) @ w1[:D] + m @ w1[D:]
    h = jnp.dot(xm, w1x_ref[...], preferred_element_type=jnp.float32)
    h = h + jnp.dot(mm, w1m_ref[...], preferred_element_type=jnp.float32)
    h = jnp.maximum(h + b1_ref[...], 0.0)       # bias + ReLU on f32 accumulator

    out = jnp.dot(h.astype(w2_ref.dtype), w2_ref[...],
                  preferred_element_type=jnp.float32) + b2_ref[...]
    o_ref[...] = out.astype(o_ref.dtype)        # bf16 lane-dense store


def _round_up(v, m):
    return ((v + m - 1) // m) * m


def _generation_params():
    """(default batch tile, vmem_limit_bytes, tensorcores per chip)."""
    kind = ""
    try:
        kind = jax.devices()[0].device_kind.lower()
    except Exception:
        pass
    if "v7" in kind:
        # v7x: 64 MiB VMEM per TC, 2 TensorCores per chip.
        return 1024, 32 * 1024 * 1024, 2
    # v5e / v6e: 128 MiB VMEM, single TensorCore -> bigger tiles, bigger budget.
    return 2048, 96 * 1024 * 1024, 1


def _resident_spec(shape):
    """Constant-index (VMEM-resident) block spec, single-buffered when supported."""
    index_map = lambda i: (0,) * len(shape)
    try:
        return pl.BlockSpec(shape, index_map, pipeline_mode=pl.Buffered(1))
    except (TypeError, AttributeError):
        # Older jax without pipeline_mode / Buffered: fall back to default buffering.
        return pl.BlockSpec(shape, index_map)


def masking_pretrainer_forward(x, mask, w1, b1, w2, b2, *, block_b=None):
    """x: [B, D], mask: [B, D], w1: [2D, H], b1: [H] or [1,H], w2: [H, C], b2: [C] or [1,C]."""
    B, D = x.shape
    H = w1.shape[1]
    C = w2.shape[1]

    def_block_b, vmem_limit, num_cores = _generation_params()
    if block_b is None:
        block_b = def_block_b

    # Weights: bf16 for the MXU (small, one-time cast; they stay VMEM-resident).
    w1x = w1[:D, :].astype(jnp.bfloat16)        # rows that multiply x*m
    w1m = w1[D:, :].astype(jnp.bfloat16)        # rows that multiply m
    b1f = jnp.reshape(b1, (1, H)).astype(jnp.float32)

    # Lane-dense output: class dim zero-padded to a multiple of 128 lanes.
    Cp = _round_up(C, 128)
    w2p = jnp.zeros((H, Cp), jnp.bfloat16).at[:, :C].set(w2.astype(jnp.bfloat16))
    b2p = jnp.zeros((1, Cp), jnp.float32).at[:, :C].set(
        jnp.reshape(b2, (1, C)).astype(jnp.float32))

    # Batch tiling: no wrapper-side padding; ceil-div grid with a (possibly
    # partial) boundary block. On multi-TC chips clamp TB so grid >= num_cores.
    tb = block_b
    if num_cores > 1:
        tb = min(tb, _round_up(max(1, -(-B // num_cores)), 16))
    if B <= tb:
        tb = B                         # single block == full array dim (always legal)
    else:
        tb = max(16, (tb // 16) * 16)  # sublane-safe tile (f32 in, bf16 out)
    grid = (-(-B // tb),)              # ceil(B / tb)

    out_padded = pl.pallas_call(
        _masking_pretrainer_kernel,
        out_shape=jax.ShapeDtypeStruct((B, Cp), jnp.bfloat16),
        grid=grid,
        in_specs=[
            pl.BlockSpec((tb, D), lambda i: (i, 0)),    # x tile    (native dtype)
            pl.BlockSpec((tb, D), lambda i: (i, 0)),    # mask tile (native dtype)
            _resident_spec((D, H)),                     # w1[:D]  (resident, 1-buffered)
            _resident_spec((D, H)),                     # w1[D:]  (resident, 1-buffered)
            _resident_spec((1, H)),                     # b1      (resident)
            _resident_spec((H, Cp)),                    # w2 (lane-padded, resident)
            _resident_spec((1, Cp)),                    # b2 (lane-padded, resident)
        ],
        out_specs=pl.BlockSpec((tb, Cp), lambda i: (i, 0)),
        compiler_params=pltpu.CompilerParams(
            dimension_semantics=("parallel",),
            vmem_limit_bytes=vmem_limit,
        ),
    )(x, mask, w1x, w1m, b1f, w2p, b2p)

    # Tiny final slice/upcast on [B, C]; logits returned in f32 like the reference.
    return out_padded[:, :C].astype(jnp.float32)


def _reference_forward(x, mask, w1, b1, w2, b2):
    x_masked = jnp.concatenate([x * mask, mask], axis=-1)
    h = jnp.maximum(x_masked @ w1 + jnp.reshape(b1, (1, -1)), 0.0)
    return h @ w2 + jnp.reshape(b2, (1, -1))


if __name__ == "__main__":
    key = jax.random.PRNGKey(0)
    B, D, H, C = 8, 16, 32, 4   # batch, features, hidden, classes

    k_x, k_m, k_w1, k_b1, k_w2, k_b2 = jax.random.split(key, 6)
    x = jax.random.normal(k_x, (B, D), dtype=jnp.float32)
    mask = (jax.random.uniform(k_m, (B, D)) > 0.5).astype(jnp.float32)

    # Deterministic synthetic parameters (shapes implied by the MLP model).
    w1 = jax.random.normal(k_w1, (2 * D, H), dtype=jnp.float32) * 0.1
    b1 = jax.random.normal(k_b1, (1, H), dtype=jnp.float32) * 0.01
    w2 = jax.random.normal(k_w2, (H, C), dtype=jnp.float32) * 0.1
    b2 = jax.random.normal(k_b2, (1, C), dtype=jnp.float32) * 0.01

    out = masking_pretrainer_forward(x, mask, w1, b1, w2, b2)
    out = jax.block_until_ready(out)

    ref = _reference_forward(x, mask, w1, b1, w2, b2)
    assert out.shape == (B, C)
    # bf16 weight streams + bf16 output store -> loosened tolerance vs. f32 reference.
    assert jnp.allclose(out, ref, atol=5e-2, rtol=5e-2), (
        f"max abs err {jnp.max(jnp.abs(out - ref))}")

    # TODO(synk): fit()/evaluate() are host-side training/eval loops (optimizer,
    # scheduler, dataloaders) — not kernel work; only forward() is implemented here.
    print("KERNEL_OK")
</pallas_src>

<mosaic_0001>
module attributes {stable_mosaic.version = 11 : i64} {
  func.func @_masking_pretrainer_kernel(%arg0: i32, %arg1: memref<8x16xf32, #tpu.memory_space<vmem>>, %arg2: memref<8x16xf32, #tpu.memory_space<vmem>>, %arg3: memref<16x32xbf16, #tpu.memory_space<vmem>>, %arg4: memref<16x32xbf16, #tpu.memory_space<vmem>>, %arg5: memref<1x32xf32, #tpu.memory_space<vmem>>, %arg6: memref<32x128xbf16, #tpu.memory_space<vmem>>, %arg7: memref<1x128xf32, #tpu.memory_space<vmem>>, %arg8: memref<8x128xbf16, #tpu.memory_space<vmem>>) attributes {dimension_semantics = [#tpu.dimension_semantics<parallel>], iteration_bounds = array<i64: 1>, scalar_prefetch = 0 : i64, scratch_operands = 0 : i64, tpu.core_type = #tpu.core_type<tc>, window_params = [{transform_indices = @transform_0, window_bounds = array<i64: 8, 16>}, {transform_indices = @transform_1, window_bounds = array<i64: 8, 16>}, {pipeline_mode = #tpu.pipeline_mode<synchronous>, transform_indices = @transform_2, window_bounds = array<i64: 16, 32>}, {pipeline_mode = #tpu.pipeline_mode<synchronous>, transform_indices = @transform_3, window_bounds = array<i64: 16, 32>}, {pipeline_mode = #tpu.pipeline_mode<synchronous>, transform_indices = @transform_4, window_bounds = array<i64: 1, 32>}, {pipeline_mode = #tpu.pipeline_mode<synchronous>, transform_indices = @transform_5, window_bounds = array<i64: 32, 128>}, {pipeline_mode = #tpu.pipeline_mode<synchronous>, transform_indices = @transform_6, window_bounds = array<i64: 1, 128>}, {transform_indices = @transform_7, window_bounds = array<i64: 8, 128>}]} {
    %c0 = arith.constant 0 : index
    %c0_0 = arith.constant 0 : index
    %0 = vector.load %arg1[%c0, %c0_0] : memref<8x16xf32, #tpu.memory_space<vmem>>, vector<8x16xf32>
    %c0_1 = arith.constant 0 : index
    %c0_2 = arith.constant 0 : index
    %1 = vector.load %arg2[%c0_1, %c0_2] : memref<8x16xf32, #tpu.memory_space<vmem>>, vector<8x16xf32>
    %2 = arith.mulf %0, %1 : vector<8x16xf32>
    %3 = arith.truncf %2 : vector<8x16xf32> to vector<8x16xbf16>
    %4 = arith.truncf %1 : vector<8x16xf32> to vector<8x16xbf16>
    %c0_3 = arith.constant 0 : index
    %c0_4 = arith.constant 0 : index
    %5 = vector.load %arg3[%c0_3, %c0_4] : memref<16x32xbf16, #tpu.memory_space<vmem>>, vector<16x32xbf16>
    %cst = arith.constant dense<0.000000e+00> : vector<8x32xf32>
    %6 = tpu.matmul %3, %5, %cst {dimension_numbers = #tpu.dot_dimension_numbers<[1], [0], [0], [1], [0, 0, 1, 1], [], []>} : vector<8x16xbf16>, vector<16x32xbf16>, vector<8x32xf32> -> vector<8x32xf32>
    %c0_5 = arith.constant 0 : index
    %c0_6 = arith.constant 0 : index
    %7 = vector.load %arg4[%c0_5, %c0_6] : memref<16x32xbf16, #tpu.memory_space<vmem>>, vector<16x32xbf16>
    %cst_7 = arith.constant dense<0.000000e+00> : vector<8x32xf32>
    %8 = tpu.matmul %4, %7, %cst_7 {dimension_numbers = #tpu.dot_dimension_numbers<[1], [0], [0], [1], [0, 0, 1, 1], [], []>} : vector<8x16xbf16>, vector<16x32xbf16>, vector<8x32xf32> -> vector<8x32xf32>
    %9 = arith.addf %6, %8 : vector<8x32xf32>
    %c0_8 = arith.constant 0 : index
    %c0_9 = arith.constant 0 : index
    %10 = vector.load %arg5[%c0_8, %c0_9] : memref<1x32xf32, #tpu.memory_space<vmem>>, vector<1x32xf32>
    %11 = vector.broadcast %10 : vector<1x32xf32> to vector<8x32xf32>
    %12 = arith.addf %9, %11 : vector<8x32xf32>
    %cst_10 = arith.constant 0.000000e+00 : f32
    %13 = vector.broadcast %cst_10 : f32 to vector<8x32xf32>
    %14 = arith.maximumf %12, %13 : vector<8x32xf32>
    %15 = arith.truncf %14 : vector<8x32xf32> to vector<8x32xbf16>
    %c0_11 = arith.constant 0 : index
    %c0_12 = arith.constant 0 : index
    %16 = vector.load %arg6[%c0_11, %c0_12] : memref<32x128xbf16, #tpu.memory_space<vmem>>, vector<32x128xbf16>
    %cst_13 = arith.constant dense<0.000000e+00> : vector<8x128xf32>
    %17 = tpu.matmul %15, %16, %cst_13 {dimension_numbers = #tpu.dot_dimension_numbers<[1], [0], [0], [1], [0, 0, 1, 1], [], []>} : vector<8x32xbf16>, vector<32x128xbf16>, vector<8x128xf32> -> vector<8x128xf32>
    %c0_14 = arith.constant 0 : index
    %c0_15 = arith.constant 0 : index
    %18 = vector.load %arg7[%c0_14, %c0_15] : memref<1x128xf32, #tpu.memory_space<vmem>>, vector<1x128xf32>
    %19 = vector.broadcast %18 : vector<1x128xf32> to vector<8x128xf32>
    %20 = arith.addf %17, %19 : vector<8x128xf32>
    %21 = arith.truncf %20 : vector<8x128xf32> to vector<8x128xbf16>
    %c0_16 = arith.constant 0 : index
    %c0_17 = arith.constant 0 : index
    %22 = vector.load %arg8[%c0_16, %c0_17] : memref<8x128xbf16, #tpu.memory_space<vmem>>, vector<8x128xbf16>
    tpu.vector_store %arg8[%c0_16, %c0_17], %21 {strides = array<i32>} : memref<8x128xbf16, #tpu.memory_space<vmem>>, vector<8x128xbf16>,
    return
  }
  func.func @transform_0(%arg0: i32) -> (i32, i32) {
    %c0_i32 = arith.constant 0 : i32
    %c0_i32_0 = arith.constant 0 : i32
    return %arg0, %c0_i32 : i32, i32
  }
  func.func @transform_1(%arg0: i32) -> (i32, i32) {
    %c0_i32 = arith.constant 0 : i32
    %c0_i32_0 = arith.constant 0 : i32
    return %arg0, %c0_i32 : i32, i32
  }
  func.func @transform_2(%arg0: i32) -> (i32, i32) {
    %c0_i32 = arith.constant 0 : i32
    %c0_i32_0 = arith.constant 0 : i32
    %c0_i32_1 = arith.constant 0 : i32
    return %c0_i32, %c0_i32_0 : i32, i32
  }
  func.func @transform_3(%arg0: i32) -> (i32, i32) {
    %c0_i32 = arith.constant 0 : i32
    %c0_i32_0 = arith.constant 0 : i32
    %c0_i32_1 = arith.constant 0 : i32
    return %c0_i32, %c0_i32_0 : i32, i32
  }
  func.func @transform_4(%arg0: i32) -> (i32, i32) {
    %c0_i32 = arith.constant 0 : i32
    %c0_i32_0 = arith.constant 0 : i32
    %c0_i32_1 = arith.constant 0 : i32
    return %c0_i32, %c0_i32_0 : i32, i32
  }
  func.func @transform_5(%arg0: i32) -> (i32, i32) {
    %c0_i32 = arith.constant 0 : i32
    %c0_i32_0 = arith.constant 0 : i32
    %c0_i32_1 = arith.constant 0 : i32
    return %c0_i32, %c0_i32_0 : i32, i32
  }
  func.func @transform_6(%arg0: i32) -> (i32, i32) {
    %c0_i32 = arith.constant 0 : i32
    %c0_i32_0 = arith.constant 0 : i32
    %c0_i32_1 = arith.constant 0 : i32
    return %c0_i32, %c0_i32_0 : i32, i32
  }
  func.func @transform_7(%arg0: i32) -> (i32, i32) {
    %c0_i32 = arith.constant 0 : i32
    %c0_i32_0 = arith.constant 0 : i32
    return %arg0, %c0_i32 : i32, i32
  }
}

</mosaic_0001>

<llo_original>
// kernel: tpu_custom_call.1
$region0: #{tpu_custom_call.1}
  #allocation0 [shape = 'u32[]', space=smem, size = 0x4, offset = 0x4, fixed_abs, tag = 'smem constant byte address 0x4 - core index']
  #allocation1 [shape = 'u32[72,128]{1,0:T(1,128)}', space=vmem, size = 0x9000, scoped, tag = 'internal scratch']
  %s0 = inlined_call_operand.hbm [shape: f32[8,16], index: 0, kind: input, shape index: {}]
  %s1 = inlined_call_operand.hbm [shape: f32[8,16], index: 1, kind: input, shape index: {}]
  %s2 = inlined_call_operand.hbm [shape: bf16[16,32], index: 2, kind: input, shape index: {}]
  %s3 = inlined_call_operand.hbm [shape: bf16[16,32], index: 3, kind: input, shape index: {}]
  %s4 = inlined_call_operand.vmem [shape: f32[1,32], index: 4, kind: input, shape index: {}]
  %s5 = inlined_call_operand.hbm [shape: bf16[32,128], index: 5, kind: input, shape index: {}]
  %s6 = inlined_call_operand.vmem [shape: f32[1,128], index: 6, kind: input, shape index: {}]
  %s7 = inlined_call_operand.hbm [shape: bf16[8,128], index: 7, kind: output, shape index: {}]
  %s8 = sld [smem:[#allocation0]]
  $region58: #{tpu_custom_call.1} parent=0
    _
  %s10 = ssub.s32 1, %s8
  %s11 = scalar_select 0, %s10, %s8
  $region1: #{tpu_custom_call.1} parent=0
    #allocation2 [shape = 'u8[4096]{0}', space=vmem, size = 0x1000, scoped, tag = 'input window, operand 0, single buffered']
    #allocation3 [shape = 's32[1]{0}', space=sflag, size = 0x4, scoped, tag = 'scoped memory for tpu_custom_call.1']
    #allocation4 [shape = 's32[1]{0}', space=sflag, size = 0x4, scoped, tag = 'scoped memory for tpu_custom_call.1']
    #allocation5 [shape = 'u8[4096]{0}', space=vmem, size = 0x1000, scoped, tag = 'input window, operand 1, single buffered']
    #allocation6 [shape = 's32[1]{0}', space=sflag, size = 0x4, scoped, tag = 'scoped memory for tpu_custom_call.1']
    #allocation7 [shape = 'u8[4096]{0}', space=vmem, size = 0x1000, scoped, tag = 'input window, operand 2, single buffered']
    #allocation8 [shape = 'u8[4096]{0}', space=vmem, size = 0x1000, scoped, tag = 'input window, operand 3, single buffered']
    #allocation9 [shape = 's32[1]{0}', space=sflag, size = 0x4, scoped, tag = 'scoped memory for tpu_custom_call.1']
    #allocation10 [shape = 'u8[8192]{0}', space=vmem, size = 0x2000, scoped, tag = 'input window, operand 5, single buffered']
    #allocation11 [shape = 'u8[2048]{0}', space=vmem, size = 0x800, scoped, tag = 'output window, operand 0, single buffered']
    %12 = vsyncpa [#allocation3], 0
    %13 = vsyncpa [#allocation6], 0
    %14 = vsyncpa [#allocation9], 0
    %15 = vsyncpa [#allocation4], 0
    // Predicated region
    $region2: #{tpu_custom_call.1} parent=1 // pred_check
      _
    $region3: #{tpu_custom_call.1} parent=1 // pred_check_branch
      %17 = sbr.rel (0) target = $region5
    $region4: #{tpu_custom_call.1} parent=1 // pred_region
      %19 = vsyncadd [#allocation3], 0
      %s21 = sshll.u32 %s0, 4
      %s22 = int_to_ptr.hbm [resolvable:$true] %s21
      %s23 = sshll.u32 [#allocation2], 4
      %s24 = int_to_ptr.vmem [resolvable:$true] %s23
      %26 = dma.hbm_to_vmem [thread:$0]  %s22, 128, %s24, [#allocation3]
    $region5: #{tpu_custom_call.1} parent=1 // pred_fallthru
      _
    // Predicated region
    $region6: #{tpu_custom_call.1} parent=1 // pred_check
      _
    $region7: #{tpu_custom_call.1} parent=1 // pred_check_branch
      %28 = sbr.rel (0) target = $region9
    $region8: #{tpu_custom_call.1} parent=1 // pred_region
      %30 = vsyncadd [#allocation6], 0
      %s32 = sshll.u32 %s1, 4
      %s33 = int_to_ptr.hbm [resolvable:$true] %s32
      %s34 = sshll.u32 [#allocation5], 4
      %s35 = int_to_ptr.vmem [resolvable:$true] %s34
      %37 = dma.hbm_to_vmem [thread:$0]  %s33, 128, %s35, [#allocation6]
    $region9: #{tpu_custom_call.1} parent=1 // pred_fallthru
      _
    // Predicated region
    $region10: #{tpu_custom_call.1} parent=1 // pred_check
      _
    $region11: #{tpu_custom_call.1} parent=1 // pred_check_branch
      %39 = sbr.rel (0) target = $region13
    $region12: #{tpu_custom_call.1} parent=1 // pred_region
      %41 = vsyncadd [#allocation6], 0
      %s42 = sshll.u32 %s2, 4
      %s43 = int_to_ptr.hbm [resolvable:$true] %s42
      %s44 = sshll.u32 [#allocation7], 4
      %s45 = int_to_ptr.vmem [resolvable:$true] %s44
      %50 = dma.hbm_to_vmem [thread:$0]  %s43, 128, %s45, [#allocation6], 64, 64, 4
    $region13: #{tpu_custom_call.1} parent=1 // pred_fallthru
      _
    // Predicated region
    $region14: #{tpu_custom_call.1} parent=1 // pred_check
      _
    $region15: #{tpu_custom_call.1} parent=1 // pred_check_branch
      %52 = sbr.rel (0) target = $region17
    $region16: #{tpu_custom_call.1} parent=1 // pred_region
      %54 = vsyncadd [#allocation9], 0
      %s55 = sshll.u32 %s3, 4
      %s56 = int_to_ptr.hbm [resolvable:$true] %s55
      %s57 = sshll.u32 [#allocation8], 4
      %s58 = int_to_ptr.vmem [resolvable:$true] %s57
      %63 = dma.hbm_to_vmem [thread:$0]  %s56, 128, %s58, [#allocation9], 64, 64, 4
    $region17: #{tpu_custom_call.1} parent=1 // pred_fallthru
      _
    // Predicated region
    $region18: #{tpu_custom_call.1} parent=1 // pred_check
      _
    $region19: #{tpu_custom_call.1} parent=1 // pred_check_branch
      %65 = sbr.rel (0) target = $region21
    $region20: #{tpu_custom_call.1} parent=1 // pred_region
      _
    $region21: #{tpu_custom_call.1} parent=1 // pred_fallthru
      _
    // Predicated region
    $region22: #{tpu_custom_call.1} parent=1 // pred_check
      _
    $region23: #{tpu_custom_call.1} parent=1 // pred_check_branch
      %67 = sbr.rel (0) target = $region25
    $region24: #{tpu_custom_call.1} parent=1 // pred_region
      %69 = vsyncadd [#allocation9], 0
      %s70 = sshll.u32 %s5, 4
      %s71 = int_to_ptr.hbm [resolvable:$true] %s70
      %s72 = sshll.u32 [#allocation10], 4
      %s73 = int_to_ptr.vmem [resolvable:$true] %s72
      %78 = dma.hbm_to_vmem [thread:$0]  %s71, 256, %s73, [#allocation9], 64, 64, 4
    $region25: #{tpu_custom_call.1} parent=1 // pred_fallthru
      _
    // Predicated region
    $region26: #{tpu_custom_call.1} parent=1 // pred_check
      _
    $region27: #{tpu_custom_call.1} parent=1 // pred_check_branch
      %80 = sbr.rel (0) target = $region29
    $region28: #{tpu_custom_call.1} parent=1 // pred_region
      _
    $region29: #{tpu_custom_call.1} parent=1 // pred_fallthru
      _
    // Predicated region
    $region30: #{tpu_custom_call.1} parent=1 // pred_check
      _
    $region31: #{tpu_custom_call.1} parent=1 // pred_check_branch
      %82 = sbr.rel (0) target = $region33
    $region32: #{tpu_custom_call.1} parent=1 // pred_region
      %84 = dma.done [#allocation3], 128
    $region33: #{tpu_custom_call.1} parent=1 // pred_fallthru
      _
    // Predicated region
    $region34: #{tpu_custom_call.1} parent=1 // pred_check
      _
    $region35: #{tpu_custom_call.1} parent=1 // pred_check_branch
      %86 = sbr.rel (0) target = $region37
    $region36: #{tpu_custom_call.1} parent=1 // pred_region
      %88 = dma.done [#allocation6], 128
    $region37: #{tpu_custom_call.1} parent=1 // pred_fallthru
      _
    // Predicated region
    $region38: #{tpu_custom_call.1} parent=1 // pred_check
      _
    $region39: #{tpu_custom_call.1} parent=1 // pred_check_branch
      %90 = sbr.rel (0) target = $region41
    $region40: #{tpu_custom_call.1} parent=1 // pred_region
      %92 = dma.done [#allocation6], 128
    $region41: #{tpu_custom_call.1} parent=1 // pred_fallthru
      _
    // Predicated region
    $region42: #{tpu_custom_call.1} parent=1 // pred_check
      _
    $region43: #{tpu_custom_call.1} parent=1 // pred_check_branch
      %94 = sbr.rel (0) target = $region45
    $region44: #{tpu_custom_call.1} parent=1 // pred_region
      %96 = dma.done [#allocation9], 128
    $region45: #{tpu_custom_call.1} parent=1 // pred_fallthru
      _
    // Predicated region
    $region46: #{tpu_custom_call.1} parent=1 // pred_check
      _
    $region47: #{tpu_custom_call.1} parent=1 // pred_check_branch
      %98 = sbr.rel (0) target = $region49
    $region48: #{tpu_custom_call.1} parent=1 // pred_region
      %100 = dma.done [#allocation9], 256
    $region49: #{tpu_custom_call.1} parent=1 // pred_fallthru
      _
    %v102 = vld [vmem:[#allocation2] sm:$0xff]
    %v103 = vld [vmem:[#allocation5] sm:$0xff]
    %v104 = vmul.f32 %v102, %v103
    %v105 = vpack.c.bf16 %v104, %v104
    %v106 = vpack.c.bf16 %v103, %v103
    %v107 = vld [vmem:[#allocation7] sm:$0xf]
    %v108 = vld [vmem:[#allocation7 + $0x4] sm:$0xf]
    %v109 = vld [vmem:[#allocation8] sm:$0xf]
    %v110 = vld [vmem:[#allocation8 + $0x4] sm:$0xf]
    %v113 = vunpack.c.l.b16 %v109
    %v114 = vunpack.c.l.b16 %v110
    %v115 = vpack.c.b16 %v114, %v113
    %vm117 = vcmask 130048
    %v119 = vsel %vm117, %v106, 0
    %121 = vmatpush.bf16.msra.mxu0 0
    %122 = vmatpush.bf16.msra.mxu0 0
    %123 = vmatpush.bf16.msra.mxu0 0
    %124 = vmatpush.bf16.msra.mxu0 0
    %125 = vmatpush.bf16.msra.mxu0 0
    %126 = vmatpush.bf16.msra.mxu0 0
    %127 = vmatpush.bf16.msra.mxu0 0
    %128 = vmatpush.bf16.msra.mxu0 %v115
    %129 = vmatmul.bf16.gmra.mxu0 %v119
    %v130 = vpop.f32.mrf.mxu0
    %v131 = vadd.f32 0.0, %v130
    %v132 = vpop.f32.mrf.mxu0
    %133 = vdwg.mxu0
    %v136 = vunpack.c.l.b16 %v107
    %v137 = vunpack.c.l.b16 %v108
    %v138 = vpack.c.b16 %v137, %v136
    %v141 = vsel %vm117, %v105, 0
    %143 = vmatpush.bf16.msra.mxu0 0
    %144 = vmatpush.bf16.msra.mxu0 0
    %145 = vmatpush.bf16.msra.mxu0 0
    %146 = vmatpush.bf16.msra.mxu0 0
    %147 = vmatpush.bf16.msra.mxu0 0
    %148 = vmatpush.bf16.msra.mxu0 0
    %149 = vmatpush.bf16.msra.mxu0 0
    %150 = vmatpush.bf16.msra.mxu0 %v138
    %151 = vmatmul.bf16.gmra.mxu0 %v141
    %v152 = vpop.f32.mrf.mxu0
    %v153 = vadd.f32 %v131, %v152
    %v154 = vpop.f32.mrf.mxu0
    %155 = vdwg.mxu0
    %v156 = vld [vmem:[%s4] sm:$0x1]
    %v158 = vperm.slane %v156, 0
    %v160 = vadd.f32 %v153, %v158
    %v161 = vmax.f32 %v160, 0.0
    %v162 = vpack.c.bf16 %v161, %v161
    %v163 = vld [vmem:[#allocation10] sm:$0xf]
    %v164 = vld [vmem:[#allocation10 + $0x4] sm:$0xf]
    %v165 = vld [vmem:[#allocation10 + $0x8] sm:$0xf]
    %v166 = vld [vmem:[#allocation10 + $0xc] sm:$0xf]
    %v167 = vld [vmem:[%s6] sm:$0x1]
    %v169 = vperm.slane %v167, 0
    %v175 = vunpack.c.l.b16 %v163
    %v176 = vunpack.c.l.b16 %v164
    %v177 = vunpack.c.l.b16 %v165
    %v178 = vunpack.c.l.b16 %v166
    %v179 = vpack.c.b16 %v176, %v175
    %v180 = vpack.c.b16 %v178, %v177
    %vm183 = vcmask 261120
    %v185 = vsel %vm183, %v162, 0
    %187 = vmatpush.bf16.msra.mxu0 0
    %188 = vmatpush.bf16.msra.mxu0 0
    %189 = vmatpush.bf16.msra.mxu0 0
    %190 = vmatpush.bf16.msra.mxu0 0
    %191 = vmatpush.bf16.msra.mxu0 0
    %192 = vmatpush.bf16.msra.mxu0 0
    %193 = vmatpush.bf16.msra.mxu0 %v180
    %194 = vmatpush.bf16.msra.mxu0 %v179
    %195 = vmatmul.bf16.gmra.mxu0 %v185
    %v196 = vpop.f32.mrf.mxu0
    %v197 = vadd.f32 %v169, %v196
    %v198 = vpop.f32.mrf.mxu0
    %199 = vdwg.mxu0
    %v200 = vpack.c.bf16 %v197, %v197
    %201 = vst [vmem:[#allocation11] sm:$0xf] %v200
    // Predicated region
    $region50: #{tpu_custom_call.1} parent=1 // pred_check
      _
    $region51: #{tpu_custom_call.1} parent=1 // pred_check_branch
      %203 = sbr.rel (0) target = $region53
    $region52: #{tpu_custom_call.1} parent=1 // pred_region
      %205 = vsyncadd [#allocation4], 0
      %s207 = sshll.u32 [#allocation11], 4
      %s208 = int_to_ptr.vmem [resolvable:$true] %s207
      %s209 = sshll.u32 %s7, 4
      %s210 = int_to_ptr.hbm [resolvable:$true] %s209
      %212 = dma.vmem_to_hbm [thread:$0]  %s208, 64, %s210, [#allocation4]
    $region53: #{tpu_custom_call.1} parent=1 // pred_fallthru
      _
    // Predicated region
    $region54: #{tpu_custom_call.1} parent=1 // pred_check
      _
    $region55: #{tpu_custom_call.1} parent=1 // pred_check_branch
      %214 = sbr.rel (0) target = $region57
    $region56: #{tpu_custom_call.1} parent=1 // pred_region
      %216 = dma.done [#allocation4], 64
    $region57: #{tpu_custom_call.1} parent=1 // pred_fallthru
      _
    %217 = vsyncpa [#allocation3], 1
    %218 = vsyncpa [#allocation6], 1
    %219 = vsyncpa [#allocation9], 1
    %220 = vsyncpa [#allocation4], 1

</llo_original>
